<compile_context>
chip_gen: v6e
topology: v6e:2x2x1
jax: 0.10.0
libtpu: 0.0.40
codegen_flags: <defaults>
</compile_context>

<pallas_src>
import functools

import jax
import jax.numpy as jnp
from jax import lax
from jax.experimental import pallas as pl
from jax.experimental.pallas import tpu as pltpu


_NEG_LARGE = -1e30  # large finite negative; exp() underflows to exactly 0.
_VMEM_LIMIT = 48 * 1024 * 1024  # explicit budget: fits v7x's 64 MiB physical VMEM.


def _logits_stats_kernel(x_ref, w_ref, b_ref, logits_ref, lse_ref,
                         m_scr, l_scr, *, vocab, tn, compute_dtype):
    j = pl.program_id(1)

    @pl.when(j == 0)
    def _():
        m_scr[...] = jnp.full_like(m_scr, _NEG_LARGE)
        l_scr[...] = jnp.zeros_like(l_scr)

    x = x_ref[...]
    w = w_ref[...]
    if compute_dtype is not None:
        x = x.astype(compute_dtype)
        w = w.astype(compute_dtype)

    # (tm, d_model) contracted with (tn, d_model) over d_model -> (tm, tn).
    # Weight stays in PyTorch (vocab, d_model) layout: no wrapper transpose.
    logits = lax.dot_general(
        x, w,
        dimension_numbers=(((1,), (1,)), ((), ())),
        preferred_element_type=jnp.float32,
    ) + b_ref[...].astype(jnp.float32)

    if vocab % tn != 0:
        # Mask garbage columns of the partial last vocab tile.
        col = j * tn + lax.broadcasted_iota(jnp.int32, logits.shape, 1)
        logits = jnp.where(col < vocab, logits, _NEG_LARGE)

    # Online max / sum-exp across vocab tiles (f32).
    m_prev = m_scr[...]
    m_new = jnp.maximum(m_prev, jnp.max(logits, axis=-1, keepdims=True))
    alpha = jnp.exp(m_prev - m_new)
    p = jnp.exp(logits - m_new)
    l_new = alpha * l_scr[...] + jnp.sum(p, axis=-1, keepdims=True)
    m_scr[...] = m_new
    l_scr[...] = l_new

    logits_ref[...] = logits
    # Running logsumexp; the value written at the last vocab tile is the one
    # that lands in HBM for this row block (resident output across j).
    lse_ref[...] = m_new + jnp.log(l_new)


def _finalize_kernel(logits_ref, lse_ref, o_ref):
    o_ref[...] = (logits_ref[...] - lse_ref[...]).astype(o_ref.dtype)


def _round_down(x, m):
    return max(m, (x // m) * m)


@functools.partial(
    jax.jit, static_argnames=("tm", "tn", "compute_dtype", "out_dtype"))
def generator_forward(x, weight, bias, *, tm=256, tn=2048,
                      compute_dtype=None, out_dtype=jnp.float32):
    """Equivalent of F.log_softmax(nn.Linear(d_model, vocab)(x), dim=-1).

    x:      (batch, seq, d_model)
    weight: (vocab, d_model)   (PyTorch Linear convention, used as-is)
    bias:   (vocab,)
    """
    b, s, d_model = x.shape
    vocab = weight.shape[0]
    n = b * s
    x2d = x.reshape(n, d_model)
    bias2d = bias.reshape(1, vocab)

    # ---- tile selection (VMEM-budget aware) ------------------------------
    if tm >= n:
        tm = n
    else:
        tm = _round_down(tm, 8)
    # Keep the streamed weight tile (tn, d_model) around <= 8 MiB per buffer.
    w_itemsize = jnp.dtype(compute_dtype or weight.dtype).itemsize
    max_tn = max(128, (8 * 1024 * 1024) // max(1, d_model * w_itemsize))
    tn = min(tn, max_tn)
    if tn >= vocab:
        tn = vocab
    else:
        tn = _round_down(tn, 128)

    grid = (pl.cdiv(n, tm), pl.cdiv(vocab, tn))

    kernel_a = functools.partial(
        _logits_stats_kernel, vocab=vocab, tn=tn, compute_dtype=compute_dtype)

    logits, lse = pl.pallas_call(
        kernel_a,
        out_shape=(
            jax.ShapeDtypeStruct((n, vocab), jnp.float32),
            jax.ShapeDtypeStruct((n, 1), jnp.float32),
        ),
        grid_spec=pltpu.PrefetchScalarGridSpec(
            num_scalar_prefetch=0,
            grid=grid,
            in_specs=[
                pl.BlockSpec((tm, d_model), lambda i, j: (i, 0)),   # x rows
                pl.BlockSpec((tn, d_model), lambda i, j: (j, 0)),   # weight tile
                pl.BlockSpec((1, tn), lambda i, j: (0, j)),         # bias tile
            ],
            out_specs=[
                pl.BlockSpec((tm, tn), lambda i, j: (i, j)),        # raw logits
                pl.BlockSpec((tm, 1), lambda i, j: (i, 0)),         # logsumexp
            ],
            scratch_shapes=[
                pltpu.VMEM((tm, 1), jnp.float32),   # running max
                pltpu.VMEM((tm, 1), jnp.float32),   # running sum-exp
            ],
        ),
        compiler_params=pltpu.CompilerParams(
            dimension_semantics=("parallel", "arbitrary"),
            vmem_limit_bytes=_VMEM_LIMIT,
        ),
    )(x2d, weight, bias2d)

    # Second (tiny) pass: out = logits - lse, in-place on the logits buffer
    # when dtypes allow aliasing.
    alias = {0: 0} if jnp.dtype(out_dtype) == jnp.dtype(jnp.float32) else {}
    out = pl.pallas_call(
        _finalize_kernel,
        out_shape=jax.ShapeDtypeStruct((n, vocab), out_dtype),
        grid_spec=pltpu.PrefetchScalarGridSpec(
            num_scalar_prefetch=0,
            grid=grid,
            in_specs=[
                pl.BlockSpec((tm, tn), lambda i, j: (i, j)),
                pl.BlockSpec((tm, 1), lambda i, j: (i, 0)),
            ],
            out_specs=pl.BlockSpec((tm, tn), lambda i, j: (i, j)),
        ),
        compiler_params=pltpu.CompilerParams(
            dimension_semantics=("parallel", "parallel"),
            vmem_limit_bytes=_VMEM_LIMIT,
        ),
        input_output_aliases=alias,
    )(logits, lse)

    return out.reshape(b, s, vocab)


if __name__ == "__main__":
    # Small, module-consistent shapes (vocab > 128 so vocab tiling is real).
    batch, seq, d_model, vocab = 2, 8, 32, 320

    key = jax.random.PRNGKey(0)
    kx, kw, kb = jax.random.split(key, 3)

    x = jax.random.normal(kx, (batch, seq, d_model), dtype=jnp.float32)
    bound = 1.0 / (d_model ** 0.5)
    weight = jax.random.uniform(
        kw, (vocab, d_model), minval=-bound, maxval=bound, dtype=jnp.float32)
    bias = jax.random.uniform(
        kb, (vocab,), minval=-bound, maxval=bound, dtype=jnp.float32)

    ref = jax.nn.log_softmax(x @ weight.T + bias, axis=-1)

    # 1) Default tiling (single vocab tile at this toy size), f32 semantics.
    out = generator_forward(x, weight, bias)
    jax.block_until_ready(out)
    assert out.shape == (batch, seq, vocab)
    assert jnp.allclose(out, ref, atol=1e-4, rtol=1e-4)

    # 2) Force multiple row AND vocab tiles (exercises online LSE + the
    #    partial-last-vocab-tile masking path: 320 % 128 != 0).
    out_tiled = generator_forward(x, weight, bias, tm=8, tn=128)
    jax.block_until_ready(out_tiled)
    assert jnp.allclose(out_tiled, ref, atol=1e-4, rtol=1e-4)

    # 3) bf16 matmul operands (v6e/v7x MXU path), f32 softmax math.
    out_bf16 = generator_forward(x, weight, bias, compute_dtype=jnp.bfloat16)
    jax.block_until_ready(out_bf16)
    assert jnp.allclose(out_bf16, ref, atol=5e-2, rtol=0)

    print("KERNEL_OK")
</pallas_src>

<mosaic_0001>
module attributes {stable_mosaic.version = 11 : i64} {
  func.func @_finalize_kernel(%arg0: i32, %arg1: i32, %arg2: memref<16x320xf32, #tpu.memory_space<vmem>>, %arg3: memref<16x1xf32, #tpu.memory_space<vmem>>, %arg4: memref<16x320xf32, #tpu.memory_space<vmem>>) attributes {dimension_semantics = [#tpu.dimension_semantics<parallel>, #tpu.dimension_semantics<parallel>], iteration_bounds = array<i64: 1, 1>, scalar_prefetch = 0 : i64, scratch_operands = 0 : i64, tpu.core_type = #tpu.core_type<tc>, window_params = [{transform_indices = @transform_0, window_bounds = array<i64: 16, 320>}, {transform_indices = @transform_1, window_bounds = array<i64: 16, 1>}, {transform_indices = @transform_2, window_bounds = array<i64: 16, 320>}]} {
    %c0 = arith.constant 0 : index
    %c0_0 = arith.constant 0 : index
    %0 = vector.load %arg2[%c0, %c0_0] : memref<16x320xf32, #tpu.memory_space<vmem>>, vector<16x320xf32>
    %c0_1 = arith.constant 0 : index
    %c0_2 = arith.constant 0 : index
    %1 = vector.load %arg3[%c0_1, %c0_2] : memref<16x1xf32, #tpu.memory_space<vmem>>, vector<16x1xf32>
    %2 = vector.broadcast %1 : vector<16x1xf32> to vector<16x320xf32>
    %3 = arith.subf %0, %2 : vector<16x320xf32>
    %c0_3 = arith.constant 0 : index
    %c0_4 = arith.constant 0 : index
    %4 = vector.load %arg4[%c0_3, %c0_4] : memref<16x320xf32, #tpu.memory_space<vmem>>, vector<16x320xf32>
    tpu.vector_store %arg4[%c0_3, %c0_4], %3 {strides = array<i32>} : memref<16x320xf32, #tpu.memory_space<vmem>>, vector<16x320xf32>,
    return
  }
  func.func @transform_0(%arg0: i32, %arg1: i32) -> (i32, i32) {
    %c0_i32 = arith.constant 0 : i32
    return %arg0, %arg1 : i32, i32
  }
  func.func @transform_1(%arg0: i32, %arg1: i32) -> (i32, i32) {
    %c0_i32 = arith.constant 0 : i32
    %c0_i32_0 = arith.constant 0 : i32
    return %arg0, %c0_i32 : i32, i32
  }
  func.func @transform_2(%arg0: i32, %arg1: i32) -> (i32, i32) {
    %c0_i32 = arith.constant 0 : i32
    return %arg0, %arg1 : i32, i32
  }
}

module attributes {stable_mosaic.version = 11 : i64} {
  func.func @_logits_stats_kernel(%arg0: i32, %arg1: i32, %arg2: memref<16x32xf32, #tpu.memory_space<vmem>>, %arg3: memref<320x32xf32, #tpu.memory_space<vmem>>, %arg4: memref<1x320xf32, #tpu.memory_space<vmem>>, %arg5: memref<16x320xf32, #tpu.memory_space<vmem>>, %arg6: memref<16x1xf32, #tpu.memory_space<vmem>>, %arg7: memref<16x1xf32, #tpu.memory_space<vmem>>, %arg8: memref<16x1xf32, #tpu.memory_space<vmem>>) attributes {dimension_semantics = [#tpu.dimension_semantics<parallel>, #tpu.dimension_semantics<arbitrary>], iteration_bounds = array<i64: 1, 1>, scalar_prefetch = 0 : i64, scratch_operands = 2 : i64, tpu.core_type = #tpu.core_type<tc>, window_params = [{transform_indices = @transform_0, window_bounds = array<i64: 16, 32>}, {transform_indices = @transform_1, window_bounds = array<i64: 320, 32>}, {transform_indices = @transform_2, window_bounds = array<i64: 1, 320>}, {transform_indices = @transform_3, window_bounds = array<i64: 16, 320>}, {transform_indices = @transform_4, window_bounds = array<i64: 16, 1>}]} {
    %c0_i32 = arith.constant 0 : i32
    %0 = arith.cmpi eq, %arg1, %c0_i32 : i32
    %1 = arith.extui %0 : i1 to i32
    %c0_i32_0 = arith.constant 0 : i32
    %2 = arith.cmpi ne, %1, %c0_i32_0 : i32
    scf.if %2 {
      %cst_20 = arith.constant -1.000000e+30 : f32
      %29 = vector.broadcast %cst_20 : f32 to vector<16x1xf32>
      %c0_21 = arith.constant 0 : index
      %c0_22 = arith.constant 0 : index
      %30 = vector.load %arg7[%c0_21, %c0_22] : memref<16x1xf32, #tpu.memory_space<vmem>>, vector<16x1xf32>
      tpu.vector_store %arg7[%c0_21, %c0_22], %29 {strides = array<i32>} : memref<16x1xf32, #tpu.memory_space<vmem>>, vector<16x1xf32>,
      %cst_23 = arith.constant 0.000000e+00 : f32
      %31 = vector.broadcast %cst_23 : f32 to vector<16x1xf32>
      %c0_24 = arith.constant 0 : index
      %c0_25 = arith.constant 0 : index
      %32 = vector.load %arg8[%c0_24, %c0_25] : memref<16x1xf32, #tpu.memory_space<vmem>>, vector<16x1xf32>
      tpu.vector_store %arg8[%c0_24, %c0_25], %31 {strides = array<i32>} : memref<16x1xf32, #tpu.memory_space<vmem>>, vector<16x1xf32>,
    } else {
    }
    %c0 = arith.constant 0 : index
    %c0_1 = arith.constant 0 : index
    %3 = vector.load %arg2[%c0, %c0_1] : memref<16x32xf32, #tpu.memory_space<vmem>>, vector<16x32xf32>
    %c0_2 = arith.constant 0 : index
    %c0_3 = arith.constant 0 : index
    %4 = vector.load %arg3[%c0_2, %c0_3] : memref<320x32xf32, #tpu.memory_space<vmem>>, vector<320x32xf32>
    %cst = arith.constant dense<0.000000e+00> : vector<16x320xf32>
    %5 = tpu.matmul %3, %4, %cst {dimension_numbers = #tpu.dot_dimension_numbers<[1], [1], [0], [0], [0, 0, 1, 0], [], []>} : vector<16x32xf32>, vector<320x32xf32>, vector<16x320xf32> -> vector<16x320xf32>
    %c0_4 = arith.constant 0 : index
    %c0_5 = arith.constant 0 : index
    %6 = vector.load %arg4[%c0_4, %c0_5] : memref<1x320xf32, #tpu.memory_space<vmem>>, vector<1x320xf32>
    %7 = vector.broadcast %6 : vector<1x320xf32> to vector<16x320xf32>
    %8 = arith.addf %5, %7 : vector<16x320xf32>
    %c0_6 = arith.constant 0 : index
    %c0_7 = arith.constant 0 : index
    %9 = vector.load %arg7[%c0_6, %c0_7] : memref<16x1xf32, #tpu.memory_space<vmem>>, vector<16x1xf32>
    %cst_8 = arith.constant dense<0xFF800000> : vector<16xf32>
    %10 = vector.multi_reduction <maximumf>, %8, %cst_8 [1] : vector<16x320xf32> to vector<16xf32>
    %11 = vector.shape_cast %10 : vector<16xf32> to vector<16x1xf32>
    %12 = arith.maximumf %9, %11 : vector<16x1xf32>
    %13 = arith.subf %9, %12 : vector<16x1xf32>
    %14 = math.exp %13 : vector<16x1xf32>
    %15 = vector.broadcast %12 : vector<16x1xf32> to vector<16x320xf32>
    %16 = arith.subf %8, %15 : vector<16x320xf32>
    %17 = math.exp %16 : vector<16x320xf32>
    %c0_9 = arith.constant 0 : index
    %c0_10 = arith.constant 0 : index
    %18 = vector.load %arg8[%c0_9, %c0_10] : memref<16x1xf32, #tpu.memory_space<vmem>>, vector<16x1xf32>
    %19 = arith.mulf %14, %18 : vector<16x1xf32>
    %cst_11 = arith.constant dense<0.000000e+00> : vector<16xf32>
    %20 = vector.multi_reduction <add>, %17, %cst_11 [1] : vector<16x320xf32> to vector<16xf32>
    %21 = vector.shape_cast %20 : vector<16xf32> to vector<16x1xf32>
    %22 = arith.addf %19, %21 : vector<16x1xf32>
    %c0_12 = arith.constant 0 : index
    %c0_13 = arith.constant 0 : index
    %23 = vector.load %arg7[%c0_12, %c0_13] : memref<16x1xf32, #tpu.memory_space<vmem>>, vector<16x1xf32>
    tpu.vector_store %arg7[%c0_12, %c0_13], %12 {strides = array<i32>} : memref<16x1xf32, #tpu.memory_space<vmem>>, vector<16x1xf32>,
    %c0_14 = arith.constant 0 : index
    %c0_15 = arith.constant 0 : index
    %24 = vector.load %arg8[%c0_14, %c0_15] : memref<16x1xf32, #tpu.memory_space<vmem>>, vector<16x1xf32>
    tpu.vector_store %arg8[%c0_14, %c0_15], %22 {strides = array<i32>} : memref<16x1xf32, #tpu.memory_space<vmem>>, vector<16x1xf32>,
    %c0_16 = arith.constant 0 : index
    %c0_17 = arith.constant 0 : index
    %25 = vector.load %arg5[%c0_16, %c0_17] : memref<16x320xf32, #tpu.memory_space<vmem>>, vector<16x320xf32>
    tpu.vector_store %arg5[%c0_16, %c0_17], %8 {strides = array<i32>} : memref<16x320xf32, #tpu.memory_space<vmem>>, vector<16x320xf32>,
    %26 = math.log %22 : vector<16x1xf32>
    %27 = arith.addf %12, %26 : vector<16x1xf32>
    %c0_18 = arith.constant 0 : index
    %c0_19 = arith.constant 0 : index
    %28 = vector.load %arg6[%c0_18, %c0_19] : memref<16x1xf32, #tpu.memory_space<vmem>>, vector<16x1xf32>
    tpu.vector_store %arg6[%c0_18, %c0_19], %27 {strides = array<i32>} : memref<16x1xf32, #tpu.memory_space<vmem>>, vector<16x1xf32>,
    return
  }
  func.func @transform_0(%arg0: i32, %arg1: i32) -> (i32, i32) {
    %c0_i32 = arith.constant 0 : i32
    %c0_i32_0 = arith.constant 0 : i32
    return %arg0, %c0_i32 : i32, i32
  }
  func.func @transform_1(%arg0: i32, %arg1: i32) -> (i32, i32) {
    %c0_i32 = arith.constant 0 : i32
    %c0_i32_0 = arith.constant 0 : i32
    return %arg1, %c0_i32 : i32, i32
  }
  func.func @transform_2(%arg0: i32, %arg1: i32) -> (i32, i32) {
    %c0_i32 = arith.constant 0 : i32
    %c0_i32_0 = arith.constant 0 : i32
    return %c0_i32, %arg1 : i32, i32
  }
  func.func @transform_3(%arg0: i32, %arg1: i32) -> (i32, i32) {
    %c0_i32 = arith.constant 0 : i32
    return %arg0, %arg1 : i32, i32
  }
  func.func @transform_4(%arg0: i32, %arg1: i32) -> (i32, i32) {
    %c0_i32 = arith.constant 0 : i32
    %c0_i32_0 = arith.constant 0 : i32
    return %arg0, %c0_i32 : i32, i32
  }
}

</mosaic_0001>

<llo_original>
// kernel: generator_forward.3
$region0: #{generator_forward.3}
  #allocation0 [shape = 'u32[]', space=smem, size = 0x4, offset = 0x4, fixed_abs, tag = 'smem constant byte address 0x4 - core index']
  #allocation1 [shape = 'u32[144,128]{1,0:T(1,128)}', space=vmem, size = 0x12000, scoped, tag = 'internal scratch']
  %s0 = inlined_call_operand.vmem [shape: f32[16,320], index: 0, kind: input, shape index: {}, may-alias: {0,2}]
  %s1 = inlined_call_operand.vmem [shape: f32[16,1], index: 1, kind: input, shape index: {}]
  %s2 = inlined_call_operand.vmem [shape: f32[16,320], index: 2, kind: output, shape index: {}, may-alias: {0,2}]
  %s3 = sld [smem:[#allocation0]]
  $region18: #{generator_forward.3} parent=0
    _
  %s5 = ssub.s32 1, %s3
  %s6 = scalar_select 0, %s5, %s3
  // Predicated region
  $region2: #{generator_forward.3} parent=0 // pred_check
    _
  $region3: #{generator_forward.3} parent=0 // pred_check_branch
    %8 = sbr.rel (0) target = $region5
  $region4: #{generator_forward.3} parent=0 // pred_region
    _
  $region5: #{generator_forward.3} parent=0 // pred_fallthru
    _
  // Predicated region
  $region6: #{generator_forward.3} parent=0 // pred_check
    _
  $region7: #{generator_forward.3} parent=0 // pred_check_branch
    %10 = sbr.rel (0) target = $region9
  $region8: #{generator_forward.3} parent=0 // pred_region
    _
  $region9: #{generator_forward.3} parent=0 // pred_fallthru
    _
  %v11 = vld [vmem:[%s0] sm:$0xff]
  %v12 = vld [vmem:[%s0 + $0x8] sm:$0xff]
  %v13 = vld [vmem:[%s0 + $0x10] sm:$0xff]
  %v14 = vld [vmem:[%s0 + $0x18] sm:$0xff]
  %v15 = vld [vmem:[%s0 + $0x20] sm:$0xff]
  %v16 = vld [vmem:[%s0 + $0x28] sm:$0xff]
  %v17 = vld [vmem:[%s1] sm:$0xff]
  %v18 = vld [vmem:[%s1 + $0x8] sm:$0xff]
  %20 = vset.pattern.permute.xlu0 0
  %21 = vperm.xlu0 %20, %v17
  %v22 = vpop.permute.xlu0 %21
  %25 = vset.pattern.permute.xlu0 0
  %26 = vperm.xlu0 %25, %v18
  %v27 = vpop.permute.xlu0 %26
  %v29 = vsub.f32 %v11, %v22
  %v30 = vsub.f32 %v12, %v22
  %v31 = vsub.f32 %v13, %v22
  %v32 = vsub.f32 %v14, %v27
  %v33 = vsub.f32 %v15, %v27
  %v34 = vsub.f32 %v16, %v27
  %35 = vst [vmem:[%s2] sm:$0xff] %v29
  %36 = vst [vmem:[%s2 + $0x8] sm:$0xff] %v30
  %vm37 = vcmask 523264
  %38 = vst.msk [vmem:[%s2 + $0x10] sm:$0xff] %vm37, %v31
  %39 = vst [vmem:[%s2 + $0x18] sm:$0xff] %v32
  %40 = vst [vmem:[%s2 + $0x20] sm:$0xff] %v33
  %41 = vst.msk [vmem:[%s2 + $0x28] sm:$0xff] %vm37, %v34
  // Predicated region
  $region10: #{generator_forward.3} parent=0 // pred_check
    _
  $region11: #{generator_forward.3} parent=0 // pred_check_branch
    %43 = sbr.rel (0) target = $region13
  $region12: #{generator_forward.3} parent=0 // pred_region
    _
  $region13: #{generator_forward.3} parent=0 // pred_fallthru
    _
  // Predicated region
  $region14: #{generator_forward.3} parent=0 // pred_check
    _
  $region15: #{generator_forward.3} parent=0 // pred_check_branch
    %45 = sbr.rel (0) target = $region17
  $region16: #{generator_forward.3} parent=0 // pred_region
    _
  $region17: #{generator_forward.3} parent=0 // pred_fallthru
    _

// kernel: generator_forward.2
$region0: #{generator_forward.2}
  #allocation0 [shape = 'u32[]', space=smem, size = 0x4, offset = 0x4, fixed_abs, tag = 'smem constant byte address 0x4 - core index']
  #allocation1 [shape = 'u32[144,128]{1,0:T(1,128)}', space=vmem, size = 0x12000, scoped, tag = 'internal scratch']
  #allocation2 [shape = 'f32[16,1]{1,0:T(8,128)}', space=vmem, size = 0x2000, scoped, tag = 'scratch operand']
  #allocation3 [shape = 'f32[16,1]{1,0:T(8,128)}', space=vmem, size = 0x2000, scoped, tag = 'scratch operand']
  %s0 = inlined_call_operand.vmem [shape: f32[16,32], index: 0, kind: input, shape index: {}]
  %s1 = inlined_call_operand.vmem [shape: f32[320,32], index: 1, kind: input, shape index: {}]
  %s2 = inlined_call_operand.vmem [shape: f32[1,320], index: 2, kind: input, shape index: {}]
  %s3 = inlined_call_operand.vmem [shape: f32[16,320], index: 3, kind: output, shape index: {0}]
  %s4 = inlined_call_operand.vmem [shape: f32[16,1], index: 4, kind: output, shape index: {1}]
  %5 = xla_tuple %s3, %s4
  %s6 = sld [smem:[#allocation0]]
  $region34: #{generator_forward.2} parent=0
    _
  %s8 = ssub.s32 1, %s6
  %s9 = scalar_select 0, %s8, %s6
  // Predicated region
  $region2: #{generator_forward.2} parent=0 // pred_check
    _
  $region3: #{generator_forward.2} parent=0 // pred_check_branch
    %11 = sbr.rel (0) target = $region5
  $region4: #{generator_forward.2} parent=0 // pred_region
    _
  $region5: #{generator_forward.2} parent=0 // pred_fallthru
    _
  // Predicated region
  $region6: #{generator_forward.2} parent=0 // pred_check
    _
  $region7: #{generator_forward.2} parent=0 // pred_check_branch
    %13 = sbr.rel (0) target = $region9
  $region8: #{generator_forward.2} parent=0 // pred_region
    _
  $region9: #{generator_forward.2} parent=0 // pred_fallthru
    _
  // Predicated region
  $region10: #{generator_forward.2} parent=0 // pred_check
    _
  $region11: #{generator_forward.2} parent=0 // pred_check_branch
    %15 = sbr.rel (0) target = $region13
  $region12: #{generator_forward.2} parent=0 // pred_region
    _
  $region13: #{generator_forward.2} parent=0 // pred_fallthru
    _
  %p16 = scmp.eq.s32.totalorder 0, 0
  // Predicated region
  $region14: #{generator_forward.2} parent=0 // pred_check
    %p17 = pneg %p16
  $region15: #{generator_forward.2} parent=0 // pred_check_branch
    %19 = sbr.rel (%p17) target = $region17
  $region16: #{generator_forward.2} parent=0 // pred_region
    %vm20 = vcmask 7168
    %21 = vst.msk [vmem:[#allocation2] sm:$0xff] %vm20, -1e+30
    %22 = vst.msk [vmem:[#allocation2 + $0x8] sm:$0xff] %vm20, -1e+30
    %23 = vst.msk [vmem:[#allocation3] sm:$0xff] %vm20, 0.0
    %24 = vst.msk [vmem:[#allocation3 + $0x8] sm:$0xff] %vm20, 0.0
  $region17: #{generator_forward.2} parent=0 // pred_fallthru
    _
  %v25 = vld [vmem:[%s0] sm:$0xff]
  %v26 = vld [vmem:[%s0 + $0x8] sm:$0xff]
  %v27 = vld [vmem:[%s1] sm:$0xff]
  %v28 = vld [vmem:[%s1 + $0x8] sm:$0xff]
  %v29 = vld [vmem:[%s1 + $0x10] sm:$0xff]
  %v30 = vld [vmem:[%s1 + $0x18] sm:$0xff]
  %v31 = vld [vmem:[%s1 + $0x20] sm:$0xff]
  %v32 = vld [vmem:[%s1 + $0x28] sm:$0xff]
  %v33 = vld [vmem:[%s1 + $0x30] sm:$0xff]
  %v34 = vld [vmem:[%s1 + $0x38] sm:$0xff]
  %v35 = vld [vmem:[%s1 + $0x40] sm:$0xff]
  %v36 = vld [vmem:[%s1 + $0x48] sm:$0xff]
  %v37 = vld [vmem:[%s1 + $0x50] sm:$0xff]
  %v38 = vld [vmem:[%s1 + $0x58] sm:$0xff]
  %v39 = vld [vmem:[%s1 + $0x60] sm:$0xff]
  %v40 = vld [vmem:[%s1 + $0x68] sm:$0xff]
  %v41 = vld [vmem:[%s1 + $0x70] sm:$0xff]
  %v42 = vld [vmem:[%s1 + $0x78] sm:$0xff]
  %v43 = vld [vmem:[%s1 + $0x80] sm:$0xff]
  %v44 = vld [vmem:[%s1 + $0x88] sm:$0xff]
  %v45 = vld [vmem:[%s1 + $0x90] sm:$0xff]
  %v46 = vld [vmem:[%s1 + $0x98] sm:$0xff]
  %v47 = vld [vmem:[%s1 + $0xa0] sm:$0xff]
  %v48 = vld [vmem:[%s1 + $0xa8] sm:$0xff]
  %v49 = vld [vmem:[%s1 + $0xb0] sm:$0xff]
  %v50 = vld [vmem:[%s1 + $0xb8] sm:$0xff]
  %v51 = vld [vmem:[%s1 + $0xc0] sm:$0xff]
  %v52 = vld [vmem:[%s1 + $0xc8] sm:$0xff]
  %v53 = vld [vmem:[%s1 + $0xd0] sm:$0xff]
  %v54 = vld [vmem:[%s1 + $0xd8] sm:$0xff]
  %v55 = vld [vmem:[%s1 + $0xe0] sm:$0xff]
  %v56 = vld [vmem:[%s1 + $0xe8] sm:$0xff]
  %v57 = vld [vmem:[%s1 + $0xf0] sm:$0xff]
  %v58 = vld [vmem:[%s1 + $0xf8] sm:$0xff]
  %v59 = vld [vmem:[%s1 + $0x100] sm:$0xff]
  %v60 = vld [vmem:[%s1 + $0x108] sm:$0xff]
  %v61 = vld [vmem:[%s1 + $0x110] sm:$0xff]
  %v62 = vld [vmem:[%s1 + $0x118] sm:$0xff]
  %v63 = vld [vmem:[%s1 + $0x120] sm:$0xff]
  %v64 = vld [vmem:[%s1 + $0x128] sm:$0xff]
  %v65 = vld [vmem:[%s1 + $0x130] sm:$0xff]
  %v66 = vld [vmem:[%s1 + $0x138] sm:$0xff]
  %v67 = vld [vmem:[%s2] sm:$0x7]
  %v69 = vlaneseq
  %v70 = vshrl.u32 %v69, 7
  %v71 = vsub.s32 0, %v70
  %v72 = vrot.slane %v67, %v71
  %v73 = vlaneseq
  %v74 = vshrl.u32 %v73, 7
  %v75 = vsub.s32 1, %v74
  %v76 = vrot.slane %v67, %v75
  %v77 = vlaneseq
  %v78 = vshrl.u32 %v77, 7
  %v79 = vsub.s32 2, %v78
  %v80 = vrot.slane %v67, %v79
  %vm84 = vcmask 261120
  %v86 = vsel %vm84, %v25, 0
  %v89 = vsel %vm84, %v26, 0
  %v92 = vsel %vm84, %v27, 0
  %v95 = vsel %vm84, %v28, 0
  %v98 = vsel %vm84, %v29, 0
  %v101 = vsel %vm84, %v30, 0
  %v104 = vsel %vm84, %v31, 0
  %v107 = vsel %vm84, %v32, 0
  %v110 = vsel %vm84, %v33, 0
  %v113 = vsel %vm84, %v34, 0
  %v116 = vsel %vm84, %v35, 0
  %v119 = vsel %vm84, %v36, 0
  %v122 = vsel %vm84, %v37, 0
  %v125 = vsel %vm84, %v38, 0
  %v128 = vsel %vm84, %v39, 0
  %v131 = vsel %vm84, %v40, 0
  %v134 = vsel %vm84, %v41, 0
  %v137 = vsel %vm84, %v42, 0
  %v140 = vsel %vm84, %v43, 0
  %v143 = vsel %vm84, %v44, 0
  %v146 = vsel %vm84, %v45, 0
  %v149 = vsel %vm84, %v46, 0
  %v152 = vsel %vm84, %v47, 0
  %v155 = vsel %vm84, %v48, 0
  %v158 = vsel %vm84, %v49, 0
  %v161 = vsel %vm84, %v50, 0
  %v164 = vsel %vm84, %v51, 0
  %v167 = vsel %vm84, %v52, 0
  %v170 = vsel %vm84, %v53, 0
  %v173 = vsel %vm84, %v54, 0
  %v176 = vsel %vm84, %v55, 0
  %v179 = vsel %vm84, %v56, 0
  %v182 = vsel %vm84, %v57, 0
  %v185 = vsel %vm84, %v58, 0
  %v188 = vsel %vm84, %v59, 0
  %v191 = vsel %vm84, %v60, 0
  %v194 = vsel %vm84, %v61, 0
  %v197 = vsel %vm84, %v62, 0
  %v200 = vsel %vm84, %v63, 0
  %v203 = vsel %vm84, %v64, 0
  %v206 = vsel %vm84, %v65, 0
  %v209 = vsel %vm84, %v66, 0
  %211 = vmatprep.subr.mxu0 0.0
  %212 = vmatpush1.xpose.msra.mxu0 %v137
  %213 = vmatprep.subr.mxu0 0.0
  %214 = vmatpush1.xpose.msra.mxu0 %v134
  %215 = vmatprep.subr.mxu0 0.0
  %216 = vmatpush1.xpose.msra.mxu0 %v131
  %217 = vmatprep.subr.mxu0 0.0
  %218 = vmatpush1.xpose.msra.mxu0 %v128
  %219 = vmatprep.subr.mxu0 0.0
  %220 = vmatpush1.xpose.msra.mxu0 %v125
  %221 = vmatprep.subr.mxu0 0.0
  %222 = vmatpush1.xpose.msra.mxu0 %v122
  %223 = vmatprep.subr.mxu0 0.0
  %224 = vmatpush1.xpose.msra.mxu0 %v119
  %225 = vmatprep.subr.mxu0 0.0
  %226 = vmatpush1.xpose.msra.mxu0 %v116
  %227 = vmatprep.subr.mxu0 0.0
  %228 = vmatpush1.xpose.msra.mxu0 %v113
  %229 = vmatprep.subr.mxu0 0.0
  %230 = vmatpush1.xpose.msra.mxu0 %v110
  %231 = vmatprep.subr.mxu0 0.0
  %232 = vmatpush1.xpose.msra.mxu0 %v107
  %233 = vmatprep.subr.mxu0 0.0
  %234 = vmatpush1.xpose.msra.mxu0 %v104
  %235 = vmatprep.subr.mxu0 0.0
  %236 = vmatpush1.xpose.msra.mxu0 %v101
  %237 = vmatprep.subr.mxu0 0.0
  %238 = vmatpush1.xpose.msra.mxu0 %v98
  %239 = vmatprep.subr.mxu0 0.0
  %240 = vmatpush1.xpose.msra.mxu0 %v95
  %241 = vmatprep.subr.mxu0 0.0
  %242 = vmatpush1.xpose.msra.mxu0 %v92
  %243 = vmatprep.subr.mxu0 0.0
  %244 = vmatpush2.xpose.msra.mxu0 %v185
  %245 = vmatprep.subr.mxu0 0.0
  %246 = vmatpush2.xpose.msra.mxu0 %v182
  %247 = vmatprep.subr.mxu0 0.0
  %248 = vmatpush2.xpose.msra.mxu0 %v179
  %249 = vmatprep.subr.mxu0 0.0
  %250 = vmatpush2.xpose.msra.mxu0 %v176
  %251 = vmatprep.subr.mxu0 0.0
  %252 = vmatpush2.xpose.msra.mxu0 %v173
  %253 = vmatprep.subr.mxu0 0.0
  %254 = vmatpush2.xpose.msra.mxu0 %v170
  %255 = vmatprep.subr.mxu0 0.0
  %256 = vmatpush2.xpose.msra.mxu0 %v167
  %257 = vmatprep.subr.mxu0 0.0
  %258 = vmatpush2.xpose.msra.mxu0 %v164
  %259 = vmatprep.subr.mxu0 0.0
  %260 = vmatpush2.xpose.msra.mxu0 %v161
  %261 = vmatprep.subr.mxu0 0.0
  %262 = vmatpush2.xpose.msra.mxu0 %v158
  %263 = vmatprep.subr.mxu0 0.0
  %264 = vmatpush2.xpose.msra.mxu0 %v155
  %265 = vmatprep.subr.mxu0 0.0
  %266 = vmatpush2.xpose.msra.mxu0 %v152
  %267 = vmatprep.subr.mxu0 0.0
  %268 = vmatpush2.xpose.msra.mxu0 %v149
  %269 = vmatprep.subr.mxu0 0.0
  %270 = vmatpush2.xpose.msra.mxu0 %v146
  %271 = vmatprep.subr.mxu0 0.0
  %272 = vmatpush2.xpose.msra.mxu0 %v143
  %273 = vmatprep.subr.mxu0 0.0
  %274 = vmatpush2.xpose.msra.mxu0 %v140
  %275 = vmatprep.mubr.f32.mxu0 0.0
  %276 = vmatmul.mubr.f32.gmra.mxu0 %v86
  %v277 = vpop.f32.mrf.mxu0
  %v278 = vadd.f32 %v72, %v277
  %v279 = vpop.f32.mrf.mxu0
  %v280 = vadd.f32 %v76, %v279
  %281 = vmatprep.mubr.f32.mxu0 0.0
  %282 = vmatmul.mubr.f32.gmra.mxu0 %v89
  %v283 = vpop.f32.mrf.mxu0
  %v284 = vadd.f32 %v72, %v283
  %v285 = vpop.f32.mrf.mxu0
  %v286 = vadd.f32 %v76, %v285
  %287 = vdwg.mxu0
  %288 = vmatprep.subr.mxu0 0.0
  %289 = vmatpush1.xpose.msra.mxu0 0.0
  %290 = vmatprep.subr.mxu0 0.0
  %291 = vmatpush1.xpose.msra.mxu0 0.0
  %292 = vmatprep.subr.mxu0 0.0
  %293 = vmatpush1.xpose.msra.mxu0 0.0
  %294 = vmatprep.subr.mxu0 0.0
  %295 = vmatpush1.xpose.msra.mxu0 0.0
  %296 = vmatprep.subr.mxu0 0.0
  %297 = vmatpush1.xpose.msra.mxu0 0.0
  %298 = vmatprep.subr.mxu0 0.0
  %299 = vmatpush1.xpose.msra.mxu0 0.0
  %300 = vmatprep.subr.mxu0 0.0
  %301 = vmatpush1.xpose.msra.mxu0 0.0
  %302 = vmatprep.subr.mxu0 0.0
  %303 = vmatpush1.xpose.msra.mxu0 0.0
  %304 = vmatprep.subr.mxu0 0.0
  %305 = vmatpush1.xpose.msra.mxu0 %v209
  %306 = vmatprep.subr.mxu0 0.0
  %307 = vmatpush1.xpose.msra.mxu0 %v206
  %308 = vmatprep.subr.mxu0 0.0
  %309 = vmatpush1.xpose.msra.mxu0 %v203
  %310 = vmatprep.subr.mxu0 0.0
  %311 = vmatpush1.xpose.msra.mxu0 %v200
  %312 = vmatprep.subr.mxu0 0.0
  %313 = vmatpush1.xpose.msra.mxu0 %v197
  %314 = vmatprep.subr.mxu0 0.0
  %315 = vmatpush1.xpose.msra.mxu0 %v194
  %316 = vmatprep.subr.mxu0 0.0
  %317 = vmatpush1.xpose.msra.mxu0 %v191
  %318 = vmatprep.subr.mxu0 0.0
  %319 = vmatpush1.xpose.msra.mxu0 %v188
  %320 = vmatprep.subr.mxu0 0.0
  %321 = vmatpush2.xpose.msra.mxu0 0.0
  %322 = vmatprep.subr.mxu0 0.0
  %323 = vmatpush2.xpose.msra.mxu0 0.0
  %324 = vmatprep.subr.mxu0 0.0
  %325 = vmatpush2.xpose.msra.mxu0 0.0
  %326 = vmatprep.subr.mxu0 0.0
  %327 = vmatpush2.xpose.msra.mxu0 0.0
  %328 = vmatprep.subr.mxu0 0.0
  %329 = vmatpush2.xpose.msra.mxu0 0.0
  %330 = vmatprep.subr.mxu0 0.0
  %331 = vmatpush2.xpose.msra.mxu0 0.0
  %332 = vmatprep.subr.mxu0 0.0
  %333 = vmatpush2.xpose.msra.mxu0 0.0
  %334 = vmatprep.subr.mxu0 0.0
  %335 = vmatpush2.xpose.msra.mxu0 0.0
  %336 = vmatprep.subr.mxu0 0.0
  %337 = vmatpush2.xpose.msra.mxu0 0.0
  %338 = vmatprep.subr.mxu0 0.0
  %339 = vmatpush2.xpose.msra.mxu0 0.0
  %340 = vmatprep.subr.mxu0 0.0
  %341 = vmatpush2.xpose.msra.mxu0 0.0
  %342 = vmatprep.subr.mxu0 0.0
  %343 = vmatpush2.xpose.msra.mxu0 0.0
  %344 = vmatprep.subr.mxu0 0.0
  %345 = vmatpush2.xpose.msra.mxu0 0.0
  %346 = vmatprep.subr.mxu0 0.0
  %347 = vmatpush2.xpose.msra.mxu0 0.0
  %348 = vmatprep.subr.mxu0 0.0
  %349 = vmatpush2.xpose.msra.mxu0 0.0
  %350 = vmatprep.subr.mxu0 0.0
  %351 = vmatpush2.xpose.msra.mxu0 0.0
  %352 = vmatprep.mubr.f32.mxu0 0.0
  %353 = vmatmul.mubr.f32.gmra.mxu0 %v86
  %v354 = vpop.f32.mrf.mxu0
  %v355 = vadd.f32 %v80, %v354
  %v356 = vpop.f32.mrf.mxu0
  %357 = vmatprep.mubr.f32.mxu0 0.0
  %358 = vmatmul.mubr.f32.gmra.mxu0 %v89
  %v359 = vpop.f32.mrf.mxu0
  %v360 = vadd.f32 %v80, %v359
  %v361 = vpop.f32.mrf.mxu0
  %362 = vdwg.mxu0
  %v363 = vld [vmem:[#allocation2] sm:$0xff]
  %v364 = vld [vmem:[#allocation2 + $0x8] sm:$0xff]
  %vm365 = vcmask 523264
  %v366 = vsel %vm365, %v355, -inf
  %v367 = vmax.f32 %v278, %v366
  %v368 = vmax.f32 %v367, %v280
  %369 = vmax.xlane.f32.xlu0 %v368
  %v370 = vpop.xlane.xlu0 %369
  %v371 = vsel %vm365, %v360, -inf
  %v372 = vmax.f32 %v284, %v371
  %v373 = vmax.f32 %v372, %v286
  %374 = vmax.xlane.f32.xlu0 %v373
  %v375 = vpop.xlane.xlu0 %374
  %v376 = vmax.f32 %v363, %v370
  %v377 = vmax.f32 %v364, %v375
  %v378 = vsub.f32 %v363, %v376
  %v379 = vsub.f32 %v364, %v377
  %v380 = vmul.f32 %v378, 1.442695
  %v381 = vpow.pop %v380
  %v382 = vmul.f32 %v379, 1.442695
  %v383 = vpow.pop %v382
  %385 = vset.pattern.permute.xlu0 0
  %386 = vperm.xlu0 %385, %v376
  %v387 = vpop.permute.xlu0 %386
  %390 = vset.pattern.permute.xlu0 0
  %391 = vperm.xlu0 %390, %v377
  %v392 = vpop.permute.xlu0 %391
  %v394 = vsub.f32 %v278, %v387
  %v395 = vsub.f32 %v280, %v387
  %v396 = vsub.f32 %v355, %v387
  %v397 = vsub.f32 %v284, %v392
  %v398 = vsub.f32 %v286, %v392
  %v399 = vsub.f32 %v360, %v392
  %v400 = vmul.f32 %v394, 1.442695
  %v401 = vpow.pop %v400
  %v402 = vmul.f32 %v395, 1.442695
  %v403 = vpow.pop %v402
  %v404 = vmul.f32 %v396, 1.442695
  %v405 = vpow.pop %v404
  %v406 = vmul.f32 %v397, 1.442695
  %v407 = vpow.pop %v406
  %v408 = vmul.f32 %v398, 1.442695
  %v409 = vpow.pop %v408
  %v410 = vmul.f32 %v399, 1.442695
  %v411 = vpow.pop %v410
  %v412 = vld [vmem:[#allocation3] sm:$0xff]
  %v413 = vld [vmem:[#allocation3 + $0x8] sm:$0xff]
  %v414 = vmul.f32 %v381, %v412
  %v415 = vmul.f32 %v383, %v413
  %v416 = vadd.f32 %v401, %v403
  %v417 = vsel %vm365, %v405, 0.0
  %v418 = vadd.f32 %v416, %v417
  %419 = vadd.xlane.f32.xlu0 %v418
  %v420 = vpop.xlane.xlu0 %419
  %v421 = vadd.f32 %v407, %v409
  %v422 = vsel %vm365, %v411, 0.0
  %v423 = vadd.f32 %v421, %v422
  %424 = vadd.xlane.f32.xlu0 %v423
  %v425 = vpop.xlane.xlu0 %424
  %v426 = vadd.f32 %v414, %v420
  %v427 = vadd.f32 %v415, %v425
  %vm428 = vcmask 7168
  %429 = vst.msk [vmem:[#allocation2] sm:$0xff] %vm428, %v376
  %430 = vst.msk [vmem:[#allocation2 + $0x8] sm:$0xff] %vm428, %v377
  %431 = vst.msk [vmem:[#allocation3] sm:$0xff] %vm428, %v426
  %432 = vst.msk [vmem:[#allocation3 + $0x8] sm:$0xff] %vm428, %v427
  %433 = vst [vmem:[%s3] sm:$0xff] %v278
  %434 = vst [vmem:[%s3 + $0x8] sm:$0xff] %v280
  %435 = vst.msk [vmem:[%s3 + $0x10] sm:$0xff] %vm365, %v355
  %436 = vst [vmem:[%s3 + $0x18] sm:$0xff] %v284
  %437 = vst [vmem:[%s3 + $0x20] sm:$0xff] %v286
  %438 = vst.msk [vmem:[%s3 + $0x28] sm:$0xff] %vm365, %v360
  %v439 = vlog2.pop %v426
  %v440 = vmul.f32 %v439, 0.6931472
  %v441 = vlog2.pop %v427
  %v442 = vmul.f32 %v441, 0.6931472
  %v443 = vadd.f32 %v376, %v440
  %v444 = vadd.f32 %v377, %v442
  %445 = vst.msk [vmem:[%s4] sm:$0xff] %vm428, %v443
  %446 = vst.msk [vmem:[%s4 + $0x8] sm:$0xff] %vm428, %v444
  // Predicated region
  $region18: #{generator_forward.2} parent=0 // pred_check
    _
  $region19: #{generator_forward.2} parent=0 // pred_check_branch
    %448 = sbr.rel (0) target = $region21
  $region20: #{generator_forward.2} parent=0 // pred_region
    _
  $region21: #{generator_forward.2} parent=0 // pred_fallthru
    _
  // Predicated region
  $region22: #{generator_forward.2} parent=0 // pred_check
    _
  $region23: #{generator_forward.2} parent=0 // pred_check_branch
    %450 = sbr.rel (0) target = $region25
  $region24: #{generator_forward.2} parent=0 // pred_region
    _
  $region25: #{generator_forward.2} parent=0 // pred_fallthru
    _
  // Predicated region
  $region26: #{generator_forward.2} parent=0 // pred_check
    _
  $region27: #{generator_forward.2} parent=0 // pred_check_branch
    %452 = sbr.rel (0) target = $region29
  $region28: #{generator_forward.2} parent=0 // pred_region
    _
  $region29: #{generator_forward.2} parent=0 // pred_fallthru
    _
  // Predicated region
  $region30: #{generator_forward.2} parent=0 // pred_check
    _
  $region31: #{generator_forward.2} parent=0 // pred_check_branch
    %454 = sbr.rel (0) target = $region33
  $region32: #{generator_forward.2} parent=0 // pred_region
    _
  $region33: #{generator_forward.2} parent=0 // pred_fallthru
    _

</llo_original>
